<compile_context>
chip_gen: v7x
topology: tpu7x:2x2x1
jax: 0.10.0
libtpu: 0.0.40
codegen_flags: <defaults>
</compile_context>

<pallas_src>
import jax
import jax.numpy as jnp
from jax.experimental import pallas as pl
from jax.experimental.pallas import tpu as pltpu


# ---------------------------------------------------------------------------
# helpers
# ---------------------------------------------------------------------------
def _round_up(a, b):
    return ((a + b - 1) // b) * b


def _layernorm(x, gamma, beta, eps=1e-5):
    # nn.LayerNorm over the last dim (biased variance, affine).
    mean = jnp.mean(x, axis=-1, keepdims=True)
    var = jnp.mean((x - mean) ** 2, axis=-1, keepdims=True)
    return (x - mean) * jax.lax.rsqrt(var + eps) * gamma + beta


# ---------------------------------------------------------------------------
# Kernel 1: BoxEncoding MLP (one-shot, a handful of rows)
#   fc1 -> LN -> ReLU -> fc2 -> LN -> ReLU
# ---------------------------------------------------------------------------
def box_encoding_kernel(x_ref, w1_ref, b1_ref, g1_ref, be1_ref,
                        w2_ref, b2_ref, g2_ref, be2_ref, o_ref):
    f32 = jnp.float32
    h = jnp.dot(x_ref[...], w1_ref[...], preferred_element_type=f32) + b1_ref[...]
    h = jnp.maximum(_layernorm(h, g1_ref[...], be1_ref[...]), 0.0)
    of = jnp.dot(h, w2_ref[...], preferred_element_type=f32) + b2_ref[...]
    o_ref[...] = jnp.maximum(_layernorm(of, g2_ref[...], be2_ref[...]), 0.0)


# ---------------------------------------------------------------------------
# Kernel 2: per-grid-cell 2-layer MLP over streamed [pos | obj-onehot] rows.
#   h1 = relu(feat @ [wm1_pos ; obj_tab] + bm1);  out = h1 @ wm2 + bm2
# Single first-layer matmul (pos fold + obj gather fused into one table),
# bf16 operands, f32 accumulate, lane-dense f32 output.
# ---------------------------------------------------------------------------
def bev_mlp_kernel(feat_ref, w1_ref, bm1_ref, w2_ref, bm2_ref, o_ref):
    f32 = jnp.float32
    h1 = jnp.dot(feat_ref[...], w1_ref[...], preferred_element_type=f32) + bm1_ref[...]
    h1 = jnp.maximum(h1, 0.0)
    o_ref[...] = (jnp.dot(h1.astype(jnp.bfloat16), w2_ref[...],
                          preferred_element_type=f32) + bm2_ref[...])


# ---------------------------------------------------------------------------
# Parameter construction (mirrors the PyTorch module; weights stored [in, out])
# ---------------------------------------------------------------------------
def init_params(key, args):
    bd, hd, fd = args["boundingbox"], args["hiddendim"], args["featuredim"]
    pd, mh, od = args["positiondim"], args["mlphidden"], args["outputdim"]
    ks = jax.random.split(key, 4)

    def lin(k, fan_in, fan_out):
        kw, kb = jax.random.split(k)
        s = 1.0 / (fan_in ** 0.5)
        w = jax.random.uniform(kw, (fan_in, fan_out), jnp.float32, -s, s)
        b = jax.random.uniform(kb, (1, fan_out), jnp.float32, -s, s)
        return w, b

    w1, b1 = lin(ks[0], bd, hd)
    w2, b2 = lin(ks[1], hd, fd)
    wm1, bm1 = lin(ks[2], pd + fd, mh)
    wm2, bm2 = lin(ks[3], mh, od)
    box = dict(w1=w1, b1=b1, g1=jnp.ones((1, hd), jnp.float32),
               be1=jnp.zeros((1, hd), jnp.float32),
               w2=w2, b2=b2, g2=jnp.ones((1, fd), jnp.float32),
               be2=jnp.zeros((1, fd), jnp.float32))
    bev = dict(wm1=wm1, bm1=bm1, wm2=wm2, bm2=bm2)
    return dict(box=box, bev=bev)


def prepare_kernel_params(params, args, H=200, W=200):
    """One-time parameter prep: split wm1 into pos / obj halves, pad wm2 to a
    lane-dense output width, precompute the sin/cos frequency vector."""
    pd, od, mh = args["positiondim"], args["outputdim"], args["mlphidden"]
    bev = params["bev"]
    wm1, wm2, bm2 = bev["wm1"], bev["wm2"], bev["bm2"]

    od_pad = _round_up(od, 128)                         # lane-dense output stores
    wm2p = jnp.pad(wm2, ((0, 0), (0, od_pad - od))).astype(jnp.bfloat16)
    bm2p = jnp.pad(bm2, ((0, 0), (0, od_pad - od)))

    # Same frequencies as the reference positional-encoding buffer.
    div = jnp.exp(jnp.arange(0, pd, 2, dtype=jnp.float32) * -(jnp.log(10000.0) / pd))

    return dict(H=H, W=W, pos_dim=pd, out_dim=od, od_pad=od_pad, mh=mh,
                box=params["box"],
                wm1_pos=wm1[:pd], wm1_obj=wm1[pd:], bm1=bev["bm1"],
                wm2p=wm2p, bm2p=bm2p, div=div)


# ---------------------------------------------------------------------------
# Forward
# ---------------------------------------------------------------------------
def bev_map_net_forward(kp, bounding_boxes, object_grids, *, row_tile=2048):
    """bounding_boxes: [num_objects, box_dim]; object_grids: sequence of [n_i, 2] (y, x)."""
    H, W = kp["H"], kp["W"]
    pd, od, od_pad = kp["pos_dim"], kp["out_dim"], kp["od_pad"]
    box = kp["box"]
    hi = jax.lax.Precision.HIGHEST
    f32, bf16 = jnp.float32, jnp.bfloat16

    # ---- BoxEncoding MLP: one-shot Pallas call (hoisted out of the grid) ----
    n_obj = bounding_boxes.shape[0]
    n_obj_pad = _round_up(max(n_obj, 8), 8)
    boxes_p = jnp.pad(bounding_boxes.astype(f32), ((0, n_obj_pad - n_obj), (0, 0)))
    obj_feats = pl.pallas_call(
        box_encoding_kernel,
        out_shape=jax.ShapeDtypeStruct((n_obj_pad, box["w2"].shape[1]), f32),
    )(boxes_p, box["w1"], box["b1"], box["g1"], box["be1"],
      box["w2"], box["b2"], box["g2"], box["be2"])

    # Fold obj features with the obj half of layer 1 (HIGHEST: host folds add no
    # MXU truncation) and concat with the pos half -> single first-layer table.
    obj_tab = jnp.dot(obj_feats, kp["wm1_obj"], precision=hi)       # [n_obj_pad, mh]
    w1_cat = jnp.concatenate([kp["wm1_pos"], obj_tab], axis=0)      # [pd+n_obj_pad, mh]
    fdim = _round_up(pd + n_obj_pad, 16)                            # bf16 sublane tile
    w1_cat = jnp.pad(w1_cat, ((0, fdim - w1_cat.shape[0]), (0, 0))).astype(bf16)

    # ---- per-row streamed features: interleaved sin/cos + obj one-hot -------
    all_grids = jnp.concatenate(object_grids, axis=0).astype(jnp.int32)
    object_ids = jnp.concatenate(
        [jnp.full((g.shape[0],), i, dtype=jnp.int32) for i, g in enumerate(object_grids)])
    n = all_grids.shape[0]
    y, x = all_grids[:, 0], all_grids[:, 1]

    sin_x = jnp.sin(x[:, None].astype(f32) * kp["div"][None, :])    # [n, pd/2]
    cos_y = jnp.cos(y[:, None].astype(f32) * kp["div"][None, :])    # [n, pd/2]
    pos = jnp.stack([sin_x, cos_y], axis=-1).reshape(n, pd)         # == pos_encoding[y, x]
    ooh = (object_ids[:, None] ==
           jnp.arange(n_obj_pad, dtype=jnp.int32)[None, :]).astype(f32)
    feat = jnp.concatenate([pos, ooh], axis=-1)                     # [n, pd + n_obj_pad]

    tile = min(row_tile, _round_up(max(n, 1), 16))   # multiple of 16 (bf16 sublanes)
    n_pad = _round_up(n, tile)
    feat_p = jnp.pad(feat, ((0, n_pad - n), (0, fdim - feat.shape[1]))).astype(bf16)

    consts = (w1_cat, kp["bm1"], kp["wm2p"], kp["bm2p"])
    # Per-step VMEM (tile=2048): feat 0.5 MiB + out 1 MiB, double-buffered, plus
    # tiny consts -> ~5 MiB, under the default scoped limit on every generation.
    out = pl.pallas_call(
        bev_mlp_kernel,
        out_shape=jax.ShapeDtypeStruct((n_pad, od_pad), f32),
        grid=(n_pad // tile,),
        in_specs=[pl.BlockSpec((tile, fdim), lambda i: (i, 0))]
                 + [pl.BlockSpec(c.shape, lambda i: (0, 0)) for c in consts],
        out_specs=pl.BlockSpec((tile, od_pad), lambda i: (i, 0)),
        compiler_params=pltpu.CompilerParams(dimension_semantics=("parallel",)),
    )(feat_p, *consts)

    grid_feats = out[:n, :od]          # fuses into the scatter under jit

    # TODO(synk): the data-dependent scatter of N rows into the zero-initialized
    # [H, W, out_dim] BEV map stays in plain JAX (fused under jit).  The module's
    # semantics are last-write-wins; grid cells are assumed unique per use.
    lin = y * W + x
    bev = jnp.zeros((H * W, od), f32).at[lin].set(grid_feats, unique_indices=True)
    return bev.reshape(H, W, od)


# ---------------------------------------------------------------------------
# Pure-JAX reference (mirrors the PyTorch module) for a correctness check
# ---------------------------------------------------------------------------
def make_pos_encoding(H, W, dim):
    assert dim % 2 == 0
    y = jnp.broadcast_to(jnp.arange(H, dtype=jnp.float32)[:, None], (H, W))
    x = jnp.broadcast_to(jnp.arange(W, dtype=jnp.float32)[None, :], (H, W))
    div = jnp.exp(jnp.arange(0, dim, 2, dtype=jnp.float32) * -(jnp.log(10000.0) / dim))
    pe = jnp.zeros((H, W, dim), jnp.float32)
    pe = pe.at[:, :, 0::2].set(jnp.sin(x[..., None] * div))
    pe = pe.at[:, :, 1::2].set(jnp.cos(y[..., None] * div))
    return pe


def reference_forward(params, args, bounding_boxes, object_grids, H=200, W=200):
    hi = jax.lax.Precision.HIGHEST
    box, bev = params["box"], params["bev"]
    h = jnp.dot(bounding_boxes, box["w1"], precision=hi) + box["b1"]
    h = jnp.maximum(_layernorm(h, box["g1"], box["be1"]), 0.0)
    of = jnp.dot(h, box["w2"], precision=hi) + box["b2"]
    of = jnp.maximum(_layernorm(of, box["g2"], box["be2"]), 0.0)

    pos = make_pos_encoding(H, W, args["positiondim"])
    all_grids = jnp.concatenate(object_grids, axis=0)
    ids = jnp.concatenate(
        [jnp.full((g.shape[0],), i, dtype=jnp.int32) for i, g in enumerate(object_grids)])
    y, x = all_grids[:, 0], all_grids[:, 1]
    fused = jnp.concatenate([pos[y, x], of[ids]], axis=-1)
    h1 = jnp.maximum(jnp.dot(fused, bev["wm1"], precision=hi) + bev["bm1"], 0.0)
    gf = jnp.dot(h1, bev["wm2"], precision=hi) + bev["bm2"]
    out = jnp.zeros((H, W, args["outputdim"]), jnp.float32)
    return out.at[y, x].set(gf)


# ---------------------------------------------------------------------------
if __name__ == "__main__":
    args = dict(boundingbox=8, hiddendim=32, featuredim=64,
                positiondim=64, mlphidden=128, outputdim=64)
    H, W = 200, 200                                    # bev_shape hardcoded in module

    root = jax.random.PRNGKey(0)
    k_param, k_box, k_grid = jax.random.split(root, 3)

    params = init_params(k_param, args)
    kparams = prepare_kernel_params(params, args, H, W)

    num_objects = 3
    bounding_boxes = jax.random.normal(k_box, (num_objects, args["boundingbox"]), jnp.float32)

    # Unique grid cells (keeps scatter semantics unambiguous wrt duplicates).
    sizes = [5, 4, 7]
    flat = jax.random.choice(k_grid, H * W, (sum(sizes),), replace=False)
    coords = jnp.stack([flat // W, flat % W], axis=-1).astype(jnp.int32)
    object_grids, off = [], 0
    for s in sizes:
        object_grids.append(coords[off:off + s])
        off += s
    object_grids = tuple(object_grids)

    # Whole forward (feature build, both pallas_calls, slice, scatter) under one jit.
    fwd = jax.jit(lambda boxes, grids: bev_map_net_forward(kparams, boxes, grids))
    bev_map = fwd(bounding_boxes, object_grids)
    jax.block_until_ready(bev_map)

    assert bev_map.shape == (H, W, args["outputdim"])
    assert bev_map.dtype == jnp.float32

    ref = reference_forward(params, args, bounding_boxes, object_grids, H, W)
    max_err = float(jnp.max(jnp.abs(bev_map - ref)))
    assert jnp.allclose(bev_map, ref, atol=5e-3, rtol=5e-3), max_err
    print("KERNEL_OK")
</pallas_src>

<mosaic_0001>
module attributes {stable_mosaic.version = 11 : i64} {
  func.func @box_encoding_kernel(%arg0: memref<8x8xf32, #tpu.memory_space<vmem>>, %arg1: memref<8x32xf32, #tpu.memory_space<vmem>>, %arg2: memref<1x32xf32, #tpu.memory_space<vmem>>, %arg3: memref<1x32xf32, #tpu.memory_space<vmem>>, %arg4: memref<1x32xf32, #tpu.memory_space<vmem>>, %arg5: memref<32x64xf32, #tpu.memory_space<vmem>>, %arg6: memref<1x64xf32, #tpu.memory_space<vmem>>, %arg7: memref<1x64xf32, #tpu.memory_space<vmem>>, %arg8: memref<1x64xf32, #tpu.memory_space<vmem>>, %arg9: memref<8x64xf32, #tpu.memory_space<vmem>>) attributes {dimension_semantics = [], scalar_prefetch = 0 : i64, scratch_operands = 0 : i64, tpu.core_type = #tpu.core_type<tc>} {
    %c0 = arith.constant 0 : index
    %c0_0 = arith.constant 0 : index
    %0 = vector.load %arg0[%c0, %c0_0] : memref<8x8xf32, #tpu.memory_space<vmem>>, vector<8x8xf32>
    %c0_1 = arith.constant 0 : index
    %c0_2 = arith.constant 0 : index
    %1 = vector.load %arg1[%c0_1, %c0_2] : memref<8x32xf32, #tpu.memory_space<vmem>>, vector<8x32xf32>
    %cst = arith.constant dense<0.000000e+00> : vector<8x32xf32>
    %2 = tpu.matmul %0, %1, %cst {dimension_numbers = #tpu.dot_dimension_numbers<[1], [0], [0], [1], [0, 0, 1, 1], [], []>} : vector<8x8xf32>, vector<8x32xf32>, vector<8x32xf32> -> vector<8x32xf32>
    %c0_3 = arith.constant 0 : index
    %c0_4 = arith.constant 0 : index
    %3 = vector.load %arg2[%c0_3, %c0_4] : memref<1x32xf32, #tpu.memory_space<vmem>>, vector<1x32xf32>
    %4 = vector.broadcast %3 : vector<1x32xf32> to vector<8x32xf32>
    %5 = arith.addf %2, %4 : vector<8x32xf32>
    %c0_5 = arith.constant 0 : index
    %c0_6 = arith.constant 0 : index
    %6 = vector.load %arg3[%c0_5, %c0_6] : memref<1x32xf32, #tpu.memory_space<vmem>>, vector<1x32xf32>
    %c0_7 = arith.constant 0 : index
    %c0_8 = arith.constant 0 : index
    %7 = vector.load %arg4[%c0_7, %c0_8] : memref<1x32xf32, #tpu.memory_space<vmem>>, vector<1x32xf32>
    %cst_9 = arith.constant dense<0.000000e+00> : vector<8xf32>
    %8 = vector.multi_reduction <add>, %5, %cst_9 [1] : vector<8x32xf32> to vector<8xf32>
    %9 = vector.shape_cast %8 : vector<8xf32> to vector<8x1xf32>
    %cst_10 = arith.constant 3.200000e+01 : f32
    %10 = vector.broadcast %cst_10 : f32 to vector<8x1xf32>
    %11 = arith.divf %9, %10 : vector<8x1xf32>
    %12 = vector.broadcast %11 : vector<8x1xf32> to vector<8x32xf32>
    %13 = arith.subf %5, %12 : vector<8x32xf32>
    %14 = arith.mulf %13, %13 : vector<8x32xf32>
    %cst_11 = arith.constant dense<0.000000e+00> : vector<8xf32>
    %15 = vector.multi_reduction <add>, %14, %cst_11 [1] : vector<8x32xf32> to vector<8xf32>
    %16 = vector.shape_cast %15 : vector<8xf32> to vector<8x1xf32>
    %cst_12 = arith.constant 3.200000e+01 : f32
    %17 = vector.broadcast %cst_12 : f32 to vector<8x1xf32>
    %18 = arith.divf %16, %17 : vector<8x1xf32>
    %19 = vector.broadcast %11 : vector<8x1xf32> to vector<8x32xf32>
    %20 = arith.subf %5, %19 : vector<8x32xf32>
    %cst_13 = arith.constant 9.99999974E-6 : f32
    %21 = vector.broadcast %cst_13 : f32 to vector<8x1xf32>
    %22 = arith.addf %18, %21 : vector<8x1xf32>
    %23 = math.rsqrt %22 : vector<8x1xf32>
    %24 = vector.broadcast %23 : vector<8x1xf32> to vector<8x32xf32>
    %25 = arith.mulf %20, %24 : vector<8x32xf32>
    %26 = vector.broadcast %6 : vector<1x32xf32> to vector<8x32xf32>
    %27 = arith.mulf %25, %26 : vector<8x32xf32>
    %28 = vector.broadcast %7 : vector<1x32xf32> to vector<8x32xf32>
    %29 = arith.addf %27, %28 : vector<8x32xf32>
    %cst_14 = arith.constant 0.000000e+00 : f32
    %30 = vector.broadcast %cst_14 : f32 to vector<8x32xf32>
    %31 = arith.maximumf %29, %30 : vector<8x32xf32>
    %c0_15 = arith.constant 0 : index
    %c0_16 = arith.constant 0 : index
    %32 = vector.load %arg5[%c0_15, %c0_16] : memref<32x64xf32, #tpu.memory_space<vmem>>, vector<32x64xf32>
    %cst_17 = arith.constant dense<0.000000e+00> : vector<8x64xf32>
    %33 = tpu.matmul %31, %32, %cst_17 {dimension_numbers = #tpu.dot_dimension_numbers<[1], [0], [0], [1], [0, 0, 1, 1], [], []>} : vector<8x32xf32>, vector<32x64xf32>, vector<8x64xf32> -> vector<8x64xf32>
    %c0_18 = arith.constant 0 : index
    %c0_19 = arith.constant 0 : index
    %34 = vector.load %arg6[%c0_18, %c0_19] : memref<1x64xf32, #tpu.memory_space<vmem>>, vector<1x64xf32>
    %35 = vector.broadcast %34 : vector<1x64xf32> to vector<8x64xf32>
    %36 = arith.addf %33, %35 : vector<8x64xf32>
    %c0_20 = arith.constant 0 : index
    %c0_21 = arith.constant 0 : index
    %37 = vector.load %arg7[%c0_20, %c0_21] : memref<1x64xf32, #tpu.memory_space<vmem>>, vector<1x64xf32>
    %c0_22 = arith.constant 0 : index
    %c0_23 = arith.constant 0 : index
    %38 = vector.load %arg8[%c0_22, %c0_23] : memref<1x64xf32, #tpu.memory_space<vmem>>, vector<1x64xf32>
    %cst_24 = arith.constant dense<0.000000e+00> : vector<8xf32>
    %39 = vector.multi_reduction <add>, %36, %cst_24 [1] : vector<8x64xf32> to vector<8xf32>
    %40 = vector.shape_cast %39 : vector<8xf32> to vector<8x1xf32>
    %cst_25 = arith.constant 6.400000e+01 : f32
    %41 = vector.broadcast %cst_25 : f32 to vector<8x1xf32>
    %42 = arith.divf %40, %41 : vector<8x1xf32>
    %43 = vector.broadcast %42 : vector<8x1xf32> to vector<8x64xf32>
    %44 = arith.subf %36, %43 : vector<8x64xf32>
    %45 = arith.mulf %44, %44 : vector<8x64xf32>
    %cst_26 = arith.constant dense<0.000000e+00> : vector<8xf32>
    %46 = vector.multi_reduction <add>, %45, %cst_26 [1] : vector<8x64xf32> to vector<8xf32>
    %47 = vector.shape_cast %46 : vector<8xf32> to vector<8x1xf32>
    %cst_27 = arith.constant 6.400000e+01 : f32
    %48 = vector.broadcast %cst_27 : f32 to vector<8x1xf32>
    %49 = arith.divf %47, %48 : vector<8x1xf32>
    %50 = vector.broadcast %42 : vector<8x1xf32> to vector<8x64xf32>
    %51 = arith.subf %36, %50 : vector<8x64xf32>
    %cst_28 = arith.constant 9.99999974E-6 : f32
    %52 = vector.broadcast %cst_28 : f32 to vector<8x1xf32>
    %53 = arith.addf %49, %52 : vector<8x1xf32>
    %54 = math.rsqrt %53 : vector<8x1xf32>
    %55 = vector.broadcast %54 : vector<8x1xf32> to vector<8x64xf32>
    %56 = arith.mulf %51, %55 : vector<8x64xf32>
    %57 = vector.broadcast %37 : vector<1x64xf32> to vector<8x64xf32>
    %58 = arith.mulf %56, %57 : vector<8x64xf32>
    %59 = vector.broadcast %38 : vector<1x64xf32> to vector<8x64xf32>
    %60 = arith.addf %58, %59 : vector<8x64xf32>
    %cst_29 = arith.constant 0.000000e+00 : f32
    %61 = vector.broadcast %cst_29 : f32 to vector<8x64xf32>
    %62 = arith.maximumf %60, %61 : vector<8x64xf32>
    %c0_30 = arith.constant 0 : index
    %c0_31 = arith.constant 0 : index
    %63 = vector.load %arg9[%c0_30, %c0_31] : memref<8x64xf32, #tpu.memory_space<vmem>>, vector<8x64xf32>
    tpu.vector_store %arg9[%c0_30, %c0_31], %62 {strides = array<i32>} : memref<8x64xf32, #tpu.memory_space<vmem>>, vector<8x64xf32>,
    return
  }
}

module attributes {stable_mosaic.version = 11 : i64} {
  func.func @bev_mlp_kernel(%arg0: i32, %arg1: memref<16x80xbf16, #tpu.memory_space<vmem>>, %arg2: memref<80x128xbf16, #tpu.memory_space<vmem>>, %arg3: memref<1x128xf32, #tpu.memory_space<vmem>>, %arg4: memref<128x128xbf16, #tpu.memory_space<vmem>>, %arg5: memref<1x128xf32, #tpu.memory_space<vmem>>, %arg6: memref<16x128xf32, #tpu.memory_space<vmem>>) attributes {dimension_semantics = [#tpu.dimension_semantics<parallel>], iteration_bounds = array<i64: 1>, scalar_prefetch = 0 : i64, scratch_operands = 0 : i64, tpu.core_type = #tpu.core_type<tc>, window_params = [{transform_indices = @transform_0, window_bounds = array<i64: 16, 80>}, {pipeline_mode = #tpu.pipeline_mode<synchronous>, transform_indices = @transform_1, window_bounds = array<i64: 80, 128>}, {pipeline_mode = #tpu.pipeline_mode<synchronous>, transform_indices = @transform_2, window_bounds = array<i64: 1, 128>}, {pipeline_mode = #tpu.pipeline_mode<synchronous>, transform_indices = @transform_3, window_bounds = array<i64: 128, 128>}, {pipeline_mode = #tpu.pipeline_mode<synchronous>, transform_indices = @transform_4, window_bounds = array<i64: 1, 128>}, {transform_indices = @transform_5, window_bounds = array<i64: 16, 128>}]} {
    %c0 = arith.constant 0 : index
    %c0_0 = arith.constant 0 : index
    %0 = vector.load %arg1[%c0, %c0_0] : memref<16x80xbf16, #tpu.memory_space<vmem>>, vector<16x80xbf16>
    %c0_1 = arith.constant 0 : index
    %c0_2 = arith.constant 0 : index
    %1 = vector.load %arg2[%c0_1, %c0_2] : memref<80x128xbf16, #tpu.memory_space<vmem>>, vector<80x128xbf16>
    %cst = arith.constant dense<0.000000e+00> : vector<16x128xf32>
    %2 = tpu.matmul %0, %1, %cst {dimension_numbers = #tpu.dot_dimension_numbers<[1], [0], [0], [1], [0, 0, 1, 1], [], []>} : vector<16x80xbf16>, vector<80x128xbf16>, vector<16x128xf32> -> vector<16x128xf32>
    %c0_3 = arith.constant 0 : index
    %c0_4 = arith.constant 0 : index
    %3 = vector.load %arg3[%c0_3, %c0_4] : memref<1x128xf32, #tpu.memory_space<vmem>>, vector<1x128xf32>
    %4 = vector.broadcast %3 : vector<1x128xf32> to vector<16x128xf32>
    %5 = arith.addf %2, %4 : vector<16x128xf32>
    %cst_5 = arith.constant 0.000000e+00 : f32
    %6 = vector.broadcast %cst_5 : f32 to vector<16x128xf32>
    %7 = arith.maximumf %5, %6 : vector<16x128xf32>
    %8 = arith.truncf %7 : vector<16x128xf32> to vector<16x128xbf16>
    %c0_6 = arith.constant 0 : index
    %c0_7 = arith.constant 0 : index
    %9 = vector.load %arg4[%c0_6, %c0_7] : memref<128x128xbf16, #tpu.memory_space<vmem>>, vector<128x128xbf16>
    %cst_8 = arith.constant dense<0.000000e+00> : vector<16x128xf32>
    %10 = tpu.matmul %8, %9, %cst_8 {dimension_numbers = #tpu.dot_dimension_numbers<[1], [0], [0], [1], [0, 0, 1, 1], [], []>} : vector<16x128xbf16>, vector<128x128xbf16>, vector<16x128xf32> -> vector<16x128xf32>
    %c0_9 = arith.constant 0 : index
    %c0_10 = arith.constant 0 : index
    %11 = vector.load %arg5[%c0_9, %c0_10] : memref<1x128xf32, #tpu.memory_space<vmem>>, vector<1x128xf32>
    %12 = vector.broadcast %11 : vector<1x128xf32> to vector<16x128xf32>
    %13 = arith.addf %10, %12 : vector<16x128xf32>
    %c0_11 = arith.constant 0 : index
    %c0_12 = arith.constant 0 : index
    %14 = vector.load %arg6[%c0_11, %c0_12] : memref<16x128xf32, #tpu.memory_space<vmem>>, vector<16x128xf32>
    tpu.vector_store %arg6[%c0_11, %c0_12], %13 {strides = array<i32>} : memref<16x128xf32, #tpu.memory_space<vmem>>, vector<16x128xf32>,
    return
  }
  func.func @transform_0(%arg0: i32) -> (i32, i32) {
    %c0_i32 = arith.constant 0 : i32
    %c0_i32_0 = arith.constant 0 : i32
    return %arg0, %c0_i32 : i32, i32
  }
  func.func @transform_1(%arg0: i32) -> (i32, i32) {
    %c0_i32 = arith.constant 0 : i32
    %c0_i32_0 = arith.constant 0 : i32
    %c0_i32_1 = arith.constant 0 : i32
    return %c0_i32, %c0_i32_0 : i32, i32
  }
  func.func @transform_2(%arg0: i32) -> (i32, i32) {
    %c0_i32 = arith.constant 0 : i32
    %c0_i32_0 = arith.constant 0 : i32
    %c0_i32_1 = arith.constant 0 : i32
    return %c0_i32, %c0_i32_0 : i32, i32
  }
  func.func @transform_3(%arg0: i32) -> (i32, i32) {
    %c0_i32 = arith.constant 0 : i32
    %c0_i32_0 = arith.constant 0 : i32
    %c0_i32_1 = arith.constant 0 : i32
    return %c0_i32, %c0_i32_0 : i32, i32
  }
  func.func @transform_4(%arg0: i32) -> (i32, i32) {
    %c0_i32 = arith.constant 0 : i32
    %c0_i32_0 = arith.constant 0 : i32
    %c0_i32_1 = arith.constant 0 : i32
    return %c0_i32, %c0_i32_0 : i32, i32
  }
  func.func @transform_5(%arg0: i32) -> (i32, i32) {
    %c0_i32 = arith.constant 0 : i32
    %c0_i32_0 = arith.constant 0 : i32
    return %arg0, %c0_i32 : i32, i32
  }
}

</mosaic_0001>

<llo_original>
// kernel: _lambda_.3
$region0: #{_lambda_.3}
  #allocation0 [shape = 'u32[]', space=smem, size = 0x4, offset = 0x4, fixed_abs, tag = 'smem constant byte address 0x4 - core index']
  #allocation1 [shape = 'u32[144,128]{1,0:T(1,128)}', space=vmem, size = 0x12000, scoped, tag = 'internal scratch']
  %s0 = inlined_call_operand.vmem [shape: bf16[16,80], index: 0, kind: input, shape index: {}]
  %s1 = inlined_call_operand.vmem [shape: bf16[80,128], index: 1, kind: input, shape index: {}]
  %s2 = inlined_call_operand.hbm [shape: f32[1,128], index: 2, kind: input, shape index: {}]
  %s3 = inlined_call_operand.hbm [shape: bf16[128,128], index: 3, kind: input, shape index: {}]
  %s4 = inlined_call_operand.hbm [shape: f32[1,128], index: 4, kind: input, shape index: {}]
  %s5 = inlined_call_operand.vmem [shape: f32[16,128], index: 5, kind: output, shape index: {}]
  %s6 = sld [smem:[#allocation0]]
  $region42: #{_lambda_.3} parent=0
    _
  %s8 = ssub.s32 1, %s6
  %s9 = scalar_select 0, %s8, %s6
  $region1: #{_lambda_.3} parent=0
    #allocation2 [shape = 'u8[512]{0}', space=vmem, size = 0x400, scoped, tag = 'input window, operand 2, single buffered']
    #allocation3 [shape = 's32[1]{0}', space=sflag, size = 0x4, scoped, tag = 'scoped memory for _lambda_.3']
    #allocation4 [shape = 'u8[32768]{0}', space=vmem, size = 0x8000, scoped, tag = 'input window, operand 3, single buffered']
    #allocation5 [shape = 's32[1]{0}', space=sflag, size = 0x4, scoped, tag = 'scoped memory for _lambda_.3']
    #allocation6 [shape = 'u8[512]{0}', space=vmem, size = 0x400, scoped, tag = 'input window, operand 4, single buffered']
    %10 = vsyncpa [#allocation3], 0
    %11 = vsyncpa [#allocation5], 0
    // Predicated region
    $region2: #{_lambda_.3} parent=1 // pred_check
      _
    $region3: #{_lambda_.3} parent=1 // pred_check_branch
      %13 = sbr.rel (0) target = $region5
    $region4: #{_lambda_.3} parent=1 // pred_region
      _
    $region5: #{_lambda_.3} parent=1 // pred_fallthru
      _
    // Predicated region
    $region6: #{_lambda_.3} parent=1 // pred_check
      _
    $region7: #{_lambda_.3} parent=1 // pred_check_branch
      %15 = sbr.rel (0) target = $region9
    $region8: #{_lambda_.3} parent=1 // pred_region
      _
    $region9: #{_lambda_.3} parent=1 // pred_fallthru
      _
    // Predicated region
    $region10: #{_lambda_.3} parent=1 // pred_check
      _
    $region11: #{_lambda_.3} parent=1 // pred_check_branch
      %17 = sbr.rel (0) target = $region13
    $region12: #{_lambda_.3} parent=1 // pred_region
      %s19 = ssub.s32 16, 16
      %20 = vsyncadd [#allocation3], %s19
      %s22 = sshll.u32 [#allocation2], 4
      %s23 = int_to_ptr.vmem [resolvable:$true] %s22
      %25 = dma.hbm_to_vmem [thread:$0]  %s2, 16, %s23, [#allocation3]
    $region13: #{_lambda_.3} parent=1 // pred_fallthru
      _
    // Predicated region
    $region14: #{_lambda_.3} parent=1 // pred_check
      _
    $region15: #{_lambda_.3} parent=1 // pred_check_branch
      %27 = sbr.rel (0) target = $region17
    $region16: #{_lambda_.3} parent=1 // pred_region
      %s29 = ssub.s32 1024, 1024
      %30 = vsyncadd [#allocation5], %s29
      %s31 = sshll.u32 [#allocation4], 4
      %s32 = int_to_ptr.vmem [resolvable:$true] %s31
      %37 = dma.hbm_to_vmem [thread:$0]  %s3, 1024, %s32, [#allocation5], 64, 64, 4
    $region17: #{_lambda_.3} parent=1 // pred_fallthru
      _
    // Predicated region
    $region18: #{_lambda_.3} parent=1 // pred_check
      _
    $region19: #{_lambda_.3} parent=1 // pred_check_branch
      %39 = sbr.rel (0) target = $region21
    $region20: #{_lambda_.3} parent=1 // pred_region
      %s41 = ssub.s32 16, 16
      %42 = vsyncadd [#allocation5], %s41
      %s44 = sshll.u32 [#allocation6], 4
      %s45 = int_to_ptr.vmem [resolvable:$true] %s44
      %47 = dma.hbm_to_vmem [thread:$0]  %s4, 16, %s45, [#allocation5]
    $region21: #{_lambda_.3} parent=1 // pred_fallthru
      _
    // Predicated region
    $region22: #{_lambda_.3} parent=1 // pred_check
      _
    $region23: #{_lambda_.3} parent=1 // pred_check_branch
      %49 = sbr.rel (0) target = $region25
    $region24: #{_lambda_.3} parent=1 // pred_region
      %50 = dma.done [#allocation3], 16
    $region25: #{_lambda_.3} parent=1 // pred_fallthru
      _
    // Predicated region
    $region26: #{_lambda_.3} parent=1 // pred_check
      _
    $region27: #{_lambda_.3} parent=1 // pred_check_branch
      %52 = sbr.rel (0) target = $region29
    $region28: #{_lambda_.3} parent=1 // pred_region
      %53 = dma.done [#allocation5], 1024
    $region29: #{_lambda_.3} parent=1 // pred_fallthru
      _
    // Predicated region
    $region30: #{_lambda_.3} parent=1 // pred_check
      _
    $region31: #{_lambda_.3} parent=1 // pred_check_branch
      %55 = sbr.rel (0) target = $region33
    $region32: #{_lambda_.3} parent=1 // pred_region
      %56 = dma.done [#allocation5], 16
    $region33: #{_lambda_.3} parent=1 // pred_fallthru
      _
    %v58 = vld [vmem:[%s0] sm:$0xf]
    %v59 = vld [vmem:[%s0 + $0x4] sm:$0xf]
    %v60 = vld [vmem:[%s1] sm:$0xf]
    %v61 = vld [vmem:[%s1 + $0x4] sm:$0xf]
    %v62 = vld [vmem:[%s1 + $0x8] sm:$0xf]
    %v63 = vld [vmem:[%s1 + $0xc] sm:$0xf]
    %v64 = vld [vmem:[%s1 + $0x10] sm:$0xf]
    %v65 = vld [vmem:[%s1 + $0x14] sm:$0xf]
    %v66 = vld [vmem:[%s1 + $0x18] sm:$0xf]
    %v67 = vld [vmem:[%s1 + $0x1c] sm:$0xf]
    %v68 = vld [vmem:[%s1 + $0x20] sm:$0xf]
    %v69 = vld [vmem:[%s1 + $0x24] sm:$0xf]
    %v70 = vld [vmem:[#allocation2] sm:$0x1]
    %v72 = vlaneseq
    %v73 = vshrl.u32 %v72, 7
    %v74 = vsub.s32 0, %v73
    %v75 = vrot.slane %v70, %v74
    %v79 = vunpack.c.l.b16 %v58
    %v80 = vunpack.c.l.b16 %v59
    %v81 = vpack.c.b16 %v80, %v79
    %v92 = vunpack.c.l.b16 %v60
    %v93 = vunpack.c.l.b16 %v61
    %v94 = vunpack.c.l.b16 %v62
    %v95 = vunpack.c.l.b16 %v63
    %v96 = vunpack.c.l.b16 %v64
    %v97 = vunpack.c.l.b16 %v65
    %v98 = vunpack.c.l.b16 %v66
    %v99 = vunpack.c.l.b16 %v67
    %v100 = vunpack.c.l.b16 %v68
    %v101 = vunpack.c.l.b16 %v69
    %v102 = vpack.c.b16 %v93, %v92
    %v103 = vpack.c.b16 %v95, %v94
    %v104 = vpack.c.b16 %v97, %v96
    %v105 = vpack.c.b16 %v99, %v98
    %v106 = vpack.c.b16 %v101, %v100
    %vm112 = vcmask 654336
    %v114 = vsel %vm112, %v81, 0
    %116 = vmatprep.subr.bf16.mxu0 0
    %117 = vmatpush1.bf16.msra.mxu0 %v102
    %118 = vmatprep.subr.bf16.mxu0 0
    %119 = vmatpush1.bf16.msra.mxu0 %v103
    %120 = vmatprep.subr.bf16.mxu0 0
    %121 = vmatpush1.bf16.msra.mxu0 %v104
    %122 = vmatprep.subr.bf16.mxu0 0
    %123 = vmatpush1.bf16.msra.mxu0 %v105
    %124 = vmatprep.subr.bf16.mxu0 0
    %125 = vmatpush1.bf16.msra.mxu0 %v106
    %126 = vmatprep.subr.bf16.mxu0 0
    %127 = vmatpush1.bf16.msra.mxu0 0
    %128 = vmatprep.subr.bf16.mxu0 0
    %129 = vmatpush1.bf16.msra.mxu0 0
    %130 = vmatprep.subr.bf16.mxu0 0
    %131 = vmatpush1.bf16.msra.mxu0 0
    %132 = vmatprep.subr.bf16.mxu0 0
    %133 = vmatpush1.bf16.msra.mxu0 0
    %134 = vmatprep.subr.bf16.mxu0 0
    %135 = vmatpush1.bf16.msra.mxu0 0
    %136 = vmatprep.subr.bf16.mxu0 0
    %137 = vmatpush1.bf16.msra.mxu0 0
    %138 = vmatprep.subr.bf16.mxu0 0
    %139 = vmatpush1.bf16.msra.mxu0 0
    %140 = vmatprep.subr.bf16.mxu0 0
    %141 = vmatpush1.bf16.msra.mxu0 0
    %142 = vmatprep.subr.bf16.mxu0 0
    %143 = vmatpush1.bf16.msra.mxu0 0
    %144 = vmatprep.subr.bf16.mxu0 0
    %145 = vmatpush1.bf16.msra.mxu0 0
    %146 = vmatprep.subr.bf16.mxu0 0
    %147 = vmatpush1.bf16.msra.mxu0 0
    %148 = vmatprep.mubr.bf16.mxu0 0
    %149 = vmatmul.mubr.bf16.gmra.mrb[0].mxu0 %v114
    %v150 = vpop.f32.mrb[0].mxu0
    %v151 = vadd.f32 %v75, %v150
    %v152 = vpop.f32.mrb[0].mxu0
    %v153 = vpop.f32.mrb[0].mxu0
    %v154 = vadd.f32 %v75, %v153
    %v155 = vpop.f32.mrb[0].mxu0
    %156 = vdwg.mxu0
    %v157 = vmax.f32 %v151, 0.0
    %v158 = vmax.f32 %v154, 0.0
    %v159 = vpack.c.bf16 %v158, %v157
    %v160 = vld [vmem:[#allocation4] sm:$0xf]
    %v161 = vld [vmem:[#allocation4 + $0x4] sm:$0xf]
    %v162 = vld [vmem:[#allocation4 + $0x8] sm:$0xf]
    %v163 = vld [vmem:[#allocation4 + $0xc] sm:$0xf]
    %v164 = vld [vmem:[#allocation4 + $0x10] sm:$0xf]
    %v165 = vld [vmem:[#allocation4 + $0x14] sm:$0xf]
    %v166 = vld [vmem:[#allocation4 + $0x18] sm:$0xf]
    %v167 = vld [vmem:[#allocation4 + $0x1c] sm:$0xf]
    %v168 = vld [vmem:[#allocation4 + $0x20] sm:$0xf]
    %v169 = vld [vmem:[#allocation4 + $0x24] sm:$0xf]
    %v170 = vld [vmem:[#allocation4 + $0x28] sm:$0xf]
    %v171 = vld [vmem:[#allocation4 + $0x2c] sm:$0xf]
    %v172 = vld [vmem:[#allocation4 + $0x30] sm:$0xf]
    %v173 = vld [vmem:[#allocation4 + $0x34] sm:$0xf]
    %v174 = vld [vmem:[#allocation4 + $0x38] sm:$0xf]
    %v175 = vld [vmem:[#allocation4 + $0x3c] sm:$0xf]
    %v176 = vld [vmem:[#allocation6] sm:$0x1]
    %v178 = vlaneseq
    %v179 = vshrl.u32 %v178, 7
    %v180 = vsub.s32 0, %v179
    %v181 = vrot.slane %v176, %v180
    %v199 = vunpack.c.l.b16 %v160
    %v200 = vunpack.c.l.b16 %v161
    %v201 = vunpack.c.l.b16 %v162
    %v202 = vunpack.c.l.b16 %v163
    %v203 = vunpack.c.l.b16 %v164
    %v204 = vunpack.c.l.b16 %v165
    %v205 = vunpack.c.l.b16 %v166
    %v206 = vunpack.c.l.b16 %v167
    %v207 = vunpack.c.l.b16 %v168
    %v208 = vunpack.c.l.b16 %v169
    %v209 = vunpack.c.l.b16 %v170
    %v210 = vunpack.c.l.b16 %v171
    %v211 = vunpack.c.l.b16 %v172
    %v212 = vunpack.c.l.b16 %v173
    %v213 = vunpack.c.l.b16 %v174
    %v214 = vunpack.c.l.b16 %v175
    %v215 = vpack.c.b16 %v200, %v199
    %v216 = vpack.c.b16 %v202, %v201
    %v217 = vpack.c.b16 %v204, %v203
    %v218 = vpack.c.b16 %v206, %v205
    %v219 = vpack.c.b16 %v208, %v207
    %v220 = vpack.c.b16 %v210, %v209
    %v221 = vpack.c.b16 %v212, %v211
    %v222 = vpack.c.b16 %v214, %v213
    %231 = vmatprep.subr.bf16.mxu0 0
    %232 = vmatpush1.bf16.msra.mxu0 %v215
    %233 = vmatprep.subr.bf16.mxu0 0
    %234 = vmatpush1.bf16.msra.mxu0 %v216
    %235 = vmatprep.subr.bf16.mxu0 0
    %236 = vmatpush1.bf16.msra.mxu0 %v217
    %237 = vmatprep.subr.bf16.mxu0 0
    %238 = vmatpush1.bf16.msra.mxu0 %v218
    %239 = vmatprep.subr.bf16.mxu0 0
    %240 = vmatpush1.bf16.msra.mxu0 %v219
    %241 = vmatprep.subr.bf16.mxu0 0
    %242 = vmatpush1.bf16.msra.mxu0 %v220
    %243 = vmatprep.subr.bf16.mxu0 0
    %244 = vmatpush1.bf16.msra.mxu0 %v221
    %245 = vmatprep.subr.bf16.mxu0 0
    %246 = vmatpush1.bf16.msra.mxu0 %v222
    %247 = vmatprep.subr.bf16.mxu0 0
    %248 = vmatpush1.bf16.msra.mxu0 0
    %249 = vmatprep.subr.bf16.mxu0 0
    %250 = vmatpush1.bf16.msra.mxu0 0
    %251 = vmatprep.subr.bf16.mxu0 0
    %252 = vmatpush1.bf16.msra.mxu0 0
    %253 = vmatprep.subr.bf16.mxu0 0
    %254 = vmatpush1.bf16.msra.mxu0 0
    %255 = vmatprep.subr.bf16.mxu0 0
    %256 = vmatpush1.bf16.msra.mxu0 0
    %257 = vmatprep.subr.bf16.mxu0 0
    %258 = vmatpush1.bf16.msra.mxu0 0
    %259 = vmatprep.subr.bf16.mxu0 0
    %260 = vmatpush1.bf16.msra.mxu0 0
    %261 = vmatprep.subr.bf16.mxu0 0
    %262 = vmatpush1.bf16.msra.mxu0 0
    %263 = vmatprep.mubr.bf16.mxu0 0
    %264 = vmatmul.mubr.bf16.gmra.mrb[0].mxu0 %v159
    %v265 = vpop.f32.mrb[0].mxu0
    %v266 = vadd.f32 %v181, %v265
    %v267 = vpop.f32.mrb[0].mxu0
    %v268 = vpop.f32.mrb[0].mxu0
    %v269 = vadd.f32 %v181, %v268
    %v270 = vpop.f32.mrb[0].mxu0
    %271 = vdwg.mxu0
    %272 = vst [vmem:[%s5] sm:$0xff] %v266
    %273 = vst [vmem:[%s5 + $0x8] sm:$0xff] %v269
    // Predicated region
    $region34: #{_lambda_.3} parent=1 // pred_check
      _
    $region35: #{_lambda_.3} parent=1 // pred_check_branch
      %275 = sbr.rel (0) target = $region37
    $region36: #{_lambda_.3} parent=1 // pred_region
      _
    $region37: #{_lambda_.3} parent=1 // pred_fallthru
      _
    // Predicated region
    $region38: #{_lambda_.3} parent=1 // pred_check
      _
    $region39: #{_lambda_.3} parent=1 // pred_check_branch
      %277 = sbr.rel (0) target = $region41
    $region40: #{_lambda_.3} parent=1 // pred_region
      _
    $region41: #{_lambda_.3} parent=1 // pred_fallthru
      _
    %278 = vsyncpa [#allocation3], 1
    %279 = vsyncpa [#allocation5], 1

// kernel: _lambda_.2
$region0: #{_lambda_.2}
  #allocation0 [shape = 'u32[]', space=smem, size = 0x4, offset = 0x4, fixed_abs, tag = 'smem constant byte address 0x4 - core index']
  #allocation1 [shape = 'u32[144,128]{1,0:T(1,128)}', space=vmem, size = 0x12000, scoped, tag = 'internal scratch']
  %s0 = inlined_call_operand.vmem [shape: f32[8,8], index: 0, kind: input, shape index: {}]
  %s1 = inlined_call_operand.hbm [shape: f32[8,32], index: 1, kind: input, shape index: {}]
  %s2 = inlined_call_operand.hbm [shape: f32[1,32], index: 2, kind: input, shape index: {}]
  %s3 = inlined_call_operand.vmem [shape: f32[1,32], index: 3, kind: input, shape index: {}]
  %s4 = inlined_call_operand.vmem [shape: f32[1,32], index: 4, kind: input, shape index: {}]
  %s5 = inlined_call_operand.hbm [shape: f32[32,64], index: 5, kind: input, shape index: {}]
  %s6 = inlined_call_operand.hbm [shape: f32[1,64], index: 6, kind: input, shape index: {}]
  %s7 = inlined_call_operand.vmem [shape: f32[1,64], index: 7, kind: input, shape index: {}]
  %s8 = inlined_call_operand.vmem [shape: f32[1,64], index: 8, kind: input, shape index: {}]
  %s9 = inlined_call_operand.vmem [shape: f32[8,64], index: 9, kind: output, shape index: {}]
  %s10 = sld [smem:[#allocation0]]
  $region62: #{_lambda_.2} parent=0
    _
  %s12 = ssub.s32 1, %s10
  %s13 = scalar_select 0, %s12, %s10
  $region1: #{_lambda_.2} parent=0
    #allocation2 [shape = 'u8[4096]{0}', space=vmem, size = 0x1000, scoped, tag = 'input window, operand 1, single buffered']
    #allocation3 [shape = 's32[1]{0}', space=sflag, size = 0x4, scoped, tag = 'scoped memory for _lambda_.2']
    #allocation4 [shape = 'u8[512]{0}', space=vmem, size = 0x400, scoped, tag = 'input window, operand 2, single buffered']
    #allocation5 [shape = 's32[1]{0}', space=sflag, size = 0x4, scoped, tag = 'scoped memory for _lambda_.2']
    #allocation6 [shape = 'u8[16384]{0}', space=vmem, size = 0x4000, scoped, tag = 'input window, operand 5, single buffered']
    #allocation7 [shape = 'u8[512]{0}', space=vmem, size = 0x400, scoped, tag = 'input window, operand 6, single buffered']
    #allocation8 [shape = 's32[1]{0}', space=sflag, size = 0x4, scoped, tag = 'scoped memory for _lambda_.2']
    %14 = vsyncpa [#allocation3], 0
    %15 = vsyncpa [#allocation5], 0
    %16 = vsyncpa [#allocation8], 0
    // Predicated region
    $region2: #{_lambda_.2} parent=1 // pred_check
      _
    $region3: #{_lambda_.2} parent=1 // pred_check_branch
      %18 = sbr.rel (0) target = $region5
    $region4: #{_lambda_.2} parent=1 // pred_region
      _
    $region5: #{_lambda_.2} parent=1 // pred_fallthru
      _
    // Predicated region
    $region6: #{_lambda_.2} parent=1 // pred_check
      _
    $region7: #{_lambda_.2} parent=1 // pred_check_branch
      %20 = sbr.rel (0) target = $region9
    $region8: #{_lambda_.2} parent=1 // pred_region
      %s22 = ssub.s32 128, 128
      %23 = vsyncadd [#allocation3], %s22
      %s25 = sshll.u32 [#allocation2], 4
      %s26 = int_to_ptr.vmem [resolvable:$true] %s25
      %28 = dma.hbm_to_vmem [thread:$0]  %s1, 128, %s26, [#allocation3]
    $region9: #{_lambda_.2} parent=1 // pred_fallthru
      _
    // Predicated region
    $region10: #{_lambda_.2} parent=1 // pred_check
      _
    $region11: #{_lambda_.2} parent=1 // pred_check_branch
      %30 = sbr.rel (0) target = $region13
    $region12: #{_lambda_.2} parent=1 // pred_region
      %s32 = ssub.s32 16, 16
      %33 = vsyncadd [#allocation5], %s32
      %s35 = sshll.u32 [#allocation4], 4
      %s36 = int_to_ptr.vmem [resolvable:$true] %s35
      %38 = dma.hbm_to_vmem [thread:$0]  %s2, 16, %s36, [#allocation5]
    $region13: #{_lambda_.2} parent=1 // pred_fallthru
      _
    // Predicated region
    $region14: #{_lambda_.2} parent=1 // pred_check
      _
    $region15: #{_lambda_.2} parent=1 // pred_check_branch
      %40 = sbr.rel (0) target = $region17
    $region16: #{_lambda_.2} parent=1 // pred_region
      _
    $region17: #{_lambda_.2} parent=1 // pred_fallthru
      _
    // Predicated region
    $region18: #{_lambda_.2} parent=1 // pred_check
      _
    $region19: #{_lambda_.2} parent=1 // pred_check_branch
      %42 = sbr.rel (0) target = $region21
    $region20: #{_lambda_.2} parent=1 // pred_region
      _
    $region21: #{_lambda_.2} parent=1 // pred_fallthru
      _
    // Predicated region
    $region22: #{_lambda_.2} parent=1 // pred_check
      _
    $region23: #{_lambda_.2} parent=1 // pred_check_branch
      %44 = sbr.rel (0) target = $region25
    $region24: #{_lambda_.2} parent=1 // pred_region
      %s46 = ssub.s32 512, 512
      %47 = vsyncadd [#allocation5], %s46
      %s48 = sshll.u32 [#allocation6], 4
      %s49 = int_to_ptr.vmem [resolvable:$true] %s48
      %54 = dma.hbm_to_vmem [thread:$0]  %s5, 512, %s49, [#allocation5], 128, 128, 8
    $region25: #{_lambda_.2} parent=1 // pred_fallthru
      _
    // Predicated region
    $region26: #{_lambda_.2} parent=1 // pred_check
      _
    $region27: #{_lambda_.2} parent=1 // pred_check_branch
      %56 = sbr.rel (0) target = $region29
    $region28: #{_lambda_.2} parent=1 // pred_region
      %s58 = ssub.s32 16, 16
      %59 = vsyncadd [#allocation8], %s58
      %s61 = sshll.u32 [#allocation7], 4
      %s62 = int_to_ptr.vmem [resolvable:$true] %s61
      %64 = dma.hbm_to_vmem [thread:$0]  %s6, 16, %s62, [#allocation8]
    $region29: #{_lambda_.2} parent=1 // pred_fallthru
      _
    // Predicated region
    $region30: #{_lambda_.2} parent=1 // pred_check
      _
    $region31: #{_lambda_.2} parent=1 // pred_check_branch
      %66 = sbr.rel (0) target = $region33
    $region32: #{_lambda_.2} parent=1 // pred_region
      _
    $region33: #{_lambda_.2} parent=1 // pred_fallthru
      _
    // Predicated region
    $region34: #{_lambda_.2} parent=1 // pred_check
      _
    $region35: #{_lambda_.2} parent=1 // pred_check_branch
      %68 = sbr.rel (0) target = $region37
    $region36: #{_lambda_.2} parent=1 // pred_region
      _
    $region37: #{_lambda_.2} parent=1 // pred_fallthru
      _
    // Predicated region
    $region38: #{_lambda_.2} parent=1 // pred_check
      _
    $region39: #{_lambda_.2} parent=1 // pred_check_branch
      %70 = sbr.rel (0) target = $region41
    $region40: #{_lambda_.2} parent=1 // pred_region
      %71 = dma.done [#allocation3], 128
    $region41: #{_lambda_.2} parent=1 // pred_fallthru
      _
    // Predicated region
    $region42: #{_lambda_.2} parent=1 // pred_check
      _
    $region43: #{_lambda_.2} parent=1 // pred_check_branch
      %73 = sbr.rel (0) target = $region45
    $region44: #{_lambda_.2} parent=1 // pred_region
      %74 = dma.done [#allocation5], 16
    $region45: #{_lambda_.2} parent=1 // pred_fallthru
      _
    // Predicated region
    $region46: #{_lambda_.2} parent=1 // pred_check
      _
    $region47: #{_lambda_.2} parent=1 // pred_check_branch
      %76 = sbr.rel (0) target = $region49
    $region48: #{_lambda_.2} parent=1 // pred_region
      %77 = dma.done [#allocation5], 512
    $region49: #{_lambda_.2} parent=1 // pred_fallthru
      _
    // Predicated region
    $region50: #{_lambda_.2} parent=1 // pred_check
      _
    $region51: #{_lambda_.2} parent=1 // pred_check_branch
      %79 = sbr.rel (0) target = $region53
    $region52: #{_lambda_.2} parent=1 // pred_region
      %80 = dma.done [#allocation8], 16
    $region53: #{_lambda_.2} parent=1 // pred_fallthru
      _
    %v81 = vld [vmem:[%s0] sm:$0xff]
    %v82 = vld [vmem:[#allocation2] sm:$0xff]
    %v83 = vld [vmem:[#allocation4] sm:$0x1]
    %v85 = vlaneseq
    %v86 = vshrl.u32 %v85, 7
    %v87 = vsub.s32 0, %v86
    %v88 = vrot.slane %v83, %v87
    %vm90 = vcmask 64512
    %v92 = vsel %vm90, %v81, 0
    %94 = vmatprep.subr.mxu0 0.0
    %95 = vmatpush1.msra.mxu0 %v82
    %96 = vmatprep.subr.mxu0 0.0
    %97 = vmatpush1.msra.mxu0 0.0
    %98 = vmatprep.subr.mxu0 0.0
    %99 = vmatpush1.msra.mxu0 0.0
    %100 = vmatprep.subr.mxu0 0.0
    %101 = vmatpush1.msra.mxu0 0.0
    %102 = vmatprep.subr.mxu0 0.0
    %103 = vmatpush1.msra.mxu0 0.0
    %104 = vmatprep.subr.mxu0 0.0
    %105 = vmatpush1.msra.mxu0 0.0
    %106 = vmatprep.subr.mxu0 0.0
    %107 = vmatpush1.msra.mxu0 0.0
    %108 = vmatprep.subr.mxu0 0.0
    %109 = vmatpush1.msra.mxu0 0.0
    %110 = vmatprep.subr.mxu0 0.0
    %111 = vmatpush1.msra.mxu0 0.0
    %112 = vmatprep.subr.mxu0 0.0
    %113 = vmatpush1.msra.mxu0 0.0
    %114 = vmatprep.subr.mxu0 0.0
    %115 = vmatpush1.msra.mxu0 0.0
    %116 = vmatprep.subr.mxu0 0.0
    %117 = vmatpush1.msra.mxu0 0.0
    %118 = vmatprep.subr.mxu0 0.0
    %119 = vmatpush1.msra.mxu0 0.0
    %120 = vmatprep.subr.mxu0 0.0
    %121 = vmatpush1.msra.mxu0 0.0
    %122 = vmatprep.subr.mxu0 0.0
    %123 = vmatpush1.msra.mxu0 0.0
    %124 = vmatprep.subr.mxu0 0.0
    %125 = vmatpush1.msra.mxu0 0.0
    %126 = vmatprep.subr.mxu0 0.0
    %127 = vmatpush1.msra.mxu0 0.0
    %128 = vmatprep.subr.mxu0 0.0
    %129 = vmatpush1.msra.mxu0 0.0
    %130 = vmatprep.subr.mxu0 0.0
    %131 = vmatpush1.msra.mxu0 0.0
    %132 = vmatprep.subr.mxu0 0.0
    %133 = vmatpush1.msra.mxu0 0.0
    %134 = vmatprep.subr.mxu0 0.0
    %135 = vmatpush1.msra.mxu0 0.0
    %136 = vmatprep.subr.mxu0 0.0
    %137 = vmatpush1.msra.mxu0 0.0
    %138 = vmatprep.subr.mxu0 0.0
    %139 = vmatpush1.msra.mxu0 0.0
    %140 = vmatprep.subr.mxu0 0.0
    %141 = vmatpush1.msra.mxu0 0.0
    %142 = vmatprep.subr.mxu0 0.0
    %143 = vmatpush1.msra.mxu0 0.0
    %144 = vmatprep.subr.mxu0 0.0
    %145 = vmatpush1.msra.mxu0 0.0
    %146 = vmatprep.subr.mxu0 0.0
    %147 = vmatpush1.msra.mxu0 0.0
    %148 = vmatprep.subr.mxu0 0.0
    %149 = vmatpush1.msra.mxu0 0.0
    %150 = vmatprep.subr.mxu0 0.0
    %151 = vmatpush1.msra.mxu0 0.0
    %152 = vmatprep.subr.mxu0 0.0
    %153 = vmatpush1.msra.mxu0 0.0
    %154 = vmatprep.subr.mxu0 0.0
    %155 = vmatpush1.msra.mxu0 0.0
    %156 = vmatprep.subr.mxu0 0.0
    %157 = vmatpush1.msra.mxu0 0.0
    %158 = vmatprep.mubr.f32.mxu0 0.0
    %159 = vmatmul.mubr.f32.gmra.mrb[0].mxu0 %v92
    %v160 = vpop.f32.mrb[0].mxu0
    %v161 = vadd.f32 %v88, %v160
    %v162 = vpop.f32.mrb[0].mxu0
    %163 = vdwg.mxu0
    %v164 = vld [vmem:[%s3] sm:$0x1]
    %v165 = vld [vmem:[%s4] sm:$0x1]
    %vm166 = vcmask 261120
    %v167 = vsel %vm166, %v161, 0.0
    %168 = vadd.xlane.f32.xlu0 %v167
    %v169 = vpop.xlane.xlu0 %168
    %v170 = vrcp.pop 32.0
    %v171 = vmul.f32 %v169, %v170
    %v172 = vsub.f32 %v161, %v171
    %v173 = vmul.f32 %v172, %v172
    %v174 = vsel %vm166, %v173, 0.0
    %175 = vadd.xlane.f32.xlu0 %v174
    %v176 = vpop.xlane.xlu0 %175
    %v177 = vmul.f32 %v176, %v170
    %v178 = vadd.f32 %v177, 1e-05
    %v179 = vrsqrt.pop %v178
    %v180 = vmul.f32 %v172, %v179
    %v182 = vlaneseq
    %v183 = vshrl.u32 %v182, 7
    %v184 = vsub.s32 0, %v183
    %v185 = vrot.slane %v164, %v184
    %v187 = vmul.f32 %v180, %v185
    %v189 = vlaneseq
    %v190 = vshrl.u32 %v189, 7
    %v191 = vsub.s32 0, %v190
    %v192 = vrot.slane %v165, %v191
    %v194 = vadd.f32 %v187, %v192
    %v195 = vmax.f32 %v194, 0.0
    %v196 = vld [vmem:[#allocation6] sm:$0xff]
    %v197 = vld [vmem:[#allocation6 + $0x8] sm:$0xff]
    %v198 = vld [vmem:[#allocation6 + $0x10] sm:$0xff]
    %v199 = vld [vmem:[#allocation6 + $0x18] sm:$0xff]
    %v200 = vld [vmem:[#allocation7] sm:$0x1]
    %v202 = vlaneseq
    %v203 = vshrl.u32 %v202, 7
    %v204 = vsub.s32 0, %v203
    %v205 = vrot.slane %v200, %v204
    %v208 = vsel %vm166, %v195, 0
    %210 = vmatprep.subr.mxu0 0.0
    %211 = vmatpush1.msra.mxu0 %v196
    %212 = vmatprep.subr.mxu0 0.0
    %213 = vmatpush1.msra.mxu0 %v197
    %214 = vmatprep.subr.mxu0 0.0
    %215 = vmatpush1.msra.mxu0 %v198
    %216 = vmatprep.subr.mxu0 0.0
    %217 = vmatpush1.msra.mxu0 %v199
    %218 = vmatprep.subr.mxu0 0.0
    %219 = vmatpush1.msra.mxu0 0.0
    %220 = vmatprep.subr.mxu0 0.0
    %221 = vmatpush1.msra.mxu0 0.0
    %222 = vmatprep.subr.mxu0 0.0
    %223 = vmatpush1.msra.mxu0 0.0
    %224 = vmatprep.subr.mxu0 0.0
    %225 = vmatpush1.msra.mxu0 0.0
    %226 = vmatprep.subr.mxu0 0.0
    %227 = vmatpush1.msra.mxu0 0.0
    %228 = vmatprep.subr.mxu0 0.0
    %229 = vmatpush1.msra.mxu0 0.0
    %230 = vmatprep.subr.mxu0 0.0
    %231 = vmatpush1.msra.mxu0 0.0
    %232 = vmatprep.subr.mxu0 0.0
    %233 = vmatpush1.msra.mxu0 0.0
    %234 = vmatprep.subr.mxu0 0.0
    %235 = vmatpush1.msra.mxu0 0.0
    %236 = vmatprep.subr.mxu0 0.0
    %237 = vmatpush1.msra.mxu0 0.0
    %238 = vmatprep.subr.mxu0 0.0
    %239 = vmatpush1.msra.mxu0 0.0
    %240 = vmatprep.subr.mxu0 0.0
    %241 = vmatpush1.msra.mxu0 0.0
    %242 = vmatprep.subr.mxu0 0.0
    %243 = vmatpush1.msra.mxu0 0.0
    %244 = vmatprep.subr.mxu0 0.0
    %245 = vmatpush1.msra.mxu0 0.0
    %246 = vmatprep.subr.mxu0 0.0
    %247 = vmatpush1.msra.mxu0 0.0
    %248 = vmatprep.subr.mxu0 0.0
    %249 = vmatpush1.msra.mxu0 0.0
    %250 = vmatprep.subr.mxu0 0.0
    %251 = vmatpush1.msra.mxu0 0.0
    %252 = vmatprep.subr.mxu0 0.0
    %253 = vmatpush1.msra.mxu0 0.0
    %254 = vmatprep.subr.mxu0 0.0
    %255 = vmatpush1.msra.mxu0 0.0
    %256 = vmatprep.subr.mxu0 0.0
    %257 = vmatpush1.msra.mxu0 0.0
    %258 = vmatprep.subr.mxu0 0.0
    %259 = vmatpush1.msra.mxu0 0.0
    %260 = vmatprep.subr.mxu0 0.0
    %261 = vmatpush1.msra.mxu0 0.0
    %262 = vmatprep.subr.mxu0 0.0
    %263 = vmatpush1.msra.mxu0 0.0
    %264 = vmatprep.subr.mxu0 0.0
    %265 = vmatpush1.msra.mxu0 0.0
    %266 = vmatprep.subr.mxu0 0.0
    %267 = vmatpush1.msra.mxu0 0.0
    %268 = vmatprep.subr.mxu0 0.0
    %269 = vmatpush1.msra.mxu0 0.0
    %270 = vmatprep.subr.mxu0 0.0
    %271 = vmatpush1.msra.mxu0 0.0
    %272 = vmatprep.subr.mxu0 0.0
    %273 = vmatpush1.msra.mxu0 0.0
    %274 = vmatprep.mubr.f32.mxu0 0.0
    %275 = vmatmul.mubr.f32.gmra.mrb[0].mxu0 %v208
    %v276 = vpop.f32.mrb[0].mxu0
    %v277 = vadd.f32 %v205, %v276
    %v278 = vpop.f32.mrb[0].mxu0
    %279 = vdwg.mxu0
    %v280 = vld [vmem:[%s7] sm:$0x1]
    %v281 = vld [vmem:[%s8] sm:$0x1]
    %vm282 = vcmask 523264
    %v283 = vsel %vm282, %v277, 0.0
    %284 = vadd.xlane.f32.xlu0 %v283
    %v285 = vpop.xlane.xlu0 %284
    %v286 = vrcp.pop 64.0
    %v287 = vmul.f32 %v285, %v286
    %v288 = vsub.f32 %v277, %v287
    %v289 = vmul.f32 %v288, %v288
    %v290 = vsel %vm282, %v289, 0.0
    %291 = vadd.xlane.f32.xlu0 %v290
    %v292 = vpop.xlane.xlu0 %291
    %v293 = vmul.f32 %v292, %v286
    %v294 = vadd.f32 %v293, 1e-05
    %v295 = vrsqrt.pop %v294
    %v296 = vmul.f32 %v288, %v295
    %v298 = vlaneseq
    %v299 = vshrl.u32 %v298, 7
    %v300 = vsub.s32 0, %v299
    %v301 = vrot.slane %v280, %v300
    %v303 = vmul.f32 %v296, %v301
    %v305 = vlaneseq
    %v306 = vshrl.u32 %v305, 7
    %v307 = vsub.s32 0, %v306
    %v308 = vrot.slane %v281, %v307
    %v310 = vadd.f32 %v303, %v308
    %v311 = vmax.f32 %v310, 0.0
    %312 = vst.msk [vmem:[%s9] sm:$0xff] %vm282, %v311
    // Predicated region
    $region54: #{_lambda_.2} parent=1 // pred_check
      _
    $region55: #{_lambda_.2} parent=1 // pred_check_branch
      %314 = sbr.rel (0) target = $region57
    $region56: #{_lambda_.2} parent=1 // pred_region
      _
    $region57: #{_lambda_.2} parent=1 // pred_fallthru
      _
    // Predicated region
    $region58: #{_lambda_.2} parent=1 // pred_check
      _
    $region59: #{_lambda_.2} parent=1 // pred_check_branch
      %316 = sbr.rel (0) target = $region61
    $region60: #{_lambda_.2} parent=1 // pred_region
      _
    $region61: #{_lambda_.2} parent=1 // pred_fallthru
      _
    %317 = vsyncpa [#allocation3], 1
    %318 = vsyncpa [#allocation5], 1
    %319 = vsyncpa [#allocation8], 1

</llo_original>
